<compile_context>
chip_gen: v7x
topology: tpu7x:2x2x1
jax: 0.10.0
libtpu: 0.0.40
codegen_flags: <defaults>
</compile_context>

<pallas_src>
import jax
import jax.numpy as jnp
from jax.experimental import pallas as pl
from jax.experimental.pallas import tpu as pltpu

IGNORE_LABEL = 999

_LANE = 128
_SUBLANE = 8


def _round_up(x, m):
    return ((x + m - 1) // m) * m


def _vmem_capacity_bytes():
    """Best-effort physical VMEM size; conservative fallback (v7x = 64 MiB)."""
    try:
        info = pltpu.get_tpu_info()
        cap = int(getattr(info, "vmem_capacity_bytes", 0))
        if cap > 0:
            return cap
    except Exception:
        pass
    return 64 << 20


def _pick_tile_n(npts, c, vmem_cap):
    """Point-axis (lane) tile sized from a VMEM budget.

    Target: per-step f32 logits working set of ~4 MiB (per-step DMA of a few
    microseconds, far above the ~0.35 us fixed grid-step overhead), capped so
    the 8-sublane-padded (1, tile_n) row buffers stay small and the whole
    double-buffered footprint fits v7x's 64 MiB VMEM.
    """
    c_pad = _round_up(max(c, 1), _SUBLANE)
    f32_budget = min(vmem_cap // 16, 4 << 20)       # per-step f32 logits budget
    tile_n = f32_budget // (c_pad * 4)
    tile_n = min(tile_n, 64 * 1024)                 # keep (1, tile_n) buffers small
    tile_n = max(_LANE, (tile_n // _LANE) * _LANE)
    if npts <= tile_n:
        return npts                                 # full extent: always legal
    return tile_n


def _vmem_limit_bytes(c, tile_n, in_itemsize, vmem_cap):
    """Explicit scoped-VMEM limit for the chosen tile (with headroom)."""
    c_pad = _round_up(max(c, 1), _SUBLANE)
    logits_in = c_pad * tile_n * in_itemsize        # one logits DMA buffer
    logits_f32 = c_pad * tile_n * 4                 # in-kernel f32 working copy
    row = _SUBLANE * tile_n * 4                     # (1, tile_n) pads to 8 sublanes
    est = (2 * logits_in                            # double-buffered logits input
           + 4 * logits_f32                         # upcast / exp / onehot / where temps
           + 2 * row                                # double-buffered targets
           + 2 * row                                # loss / weight accumulators
           + (2 << 20))                             # weight, outputs, headroom
    return int(min(0.85 * vmem_cap, max(2 * est, 32 << 20)))


def _make_ce_mask_kernel(*, ignore_label, weighted):
    """Builds the kernel body, specialized on `weighted`."""

    def kernel(*refs):
        if weighted:
            logits_ref, target_ref, weight_ref, loss_out, w_out, loss_acc, w_acc = refs
        else:
            logits_ref, target_ref, loss_out, w_out, loss_acc, w_acc = refs

        ni = pl.program_id(1)

        # Per-batch accumulators: reset at the first point-tile of every batch
        # row so the batch grid axis can be megacore-parallel on v7x.
        @pl.when(ni == 0)
        def _():
            loss_acc[...] = jnp.zeros_like(loss_acc)
            w_acc[...] = jnp.zeros_like(w_acc)

        logits = logits_ref[...].astype(jnp.float32)    # (C, TN): classes on sublanes
        tgt = target_ref[...]                           # (1, TN)  int32, lane-dense

        # Targets were padded with ignore_label in the wrapper, so the ragged
        # tail needs no in-kernel column-index test: garbage in the padded
        # columns of the logits block is where()-selected away below.
        valid = jnp.logical_and(tgt >= 0, tgt != ignore_label)

        # Numerically stable log-sum-exp over the (short) class/sublane axis.
        m = jnp.max(logits, axis=0, keepdims=True)                         # (1, TN)
        lse = m + jnp.log(jnp.sum(jnp.exp(logits - m), axis=0, keepdims=True))

        # One-hot gather of the target logit (and per-class weight if given).
        c_iota = jax.lax.broadcasted_iota(jnp.int32, logits.shape, 0)      # (C, TN)
        onehot = c_iota == tgt                                             # (C, TN)
        tgt_logit = jnp.sum(jnp.where(onehot, logits, 0.0),
                            axis=0, keepdims=True)                         # (1, TN)

        if weighted:
            w = weight_ref[...].astype(jnp.float32)                        # (C, 1)
            w_row = jnp.sum(jnp.where(onehot, w, 0.0),
                            axis=0, keepdims=True)                         # (1, TN)
        else:
            w_row = jnp.ones(tgt.shape, jnp.float32)

        # Lane-parallel partial sums (select, not multiply, so garbage in
        # masked/padded columns can never contaminate the accumulators).
        loss_acc[...] += jnp.where(valid, (lse - tgt_logit) * w_row, 0.0)
        w_acc[...] += jnp.where(valid, w_row, 0.0)

        # One cross-lane reduction per batch row, then a lane-dense store of a
        # per-batch partial (summed across batches in the wrapper).
        @pl.when(ni == pl.num_programs(1) - 1)
        def _():
            loss_out[...] = jnp.zeros_like(loss_out) + jnp.sum(loss_acc[...])
            w_out[...] = jnp.zeros_like(w_out) + jnp.sum(w_acc[...])

    return kernel


def cross_entropy_mask(predict, target, weight=None, *, size_average=True,
                       ignore_label=IGNORE_LABEL, tile_n=None):
    """JAX/Pallas equivalent of CrossEntropyMask.forward (returns a scalar)."""
    b, c, npts = predict.shape
    assert target.shape == (b, npts)

    if b == 0 or npts == 0 or c == 0:
        # Empty grid: mirror the PyTorch "no valid targets" -> 0 behavior.
        return jnp.zeros((), jnp.float32)

    vmem_cap = _vmem_capacity_bytes()
    if tile_n is None:
        tile_n = _pick_tile_n(npts, c, vmem_cap)
    elif npts <= tile_n:
        tile_n = npts
    else:
        tile_n = max(_LANE, (tile_n // _LANE) * _LANE)
    n_tiles = pl.cdiv(npts, tile_n)
    npts_pad = n_tiles * tile_n

    # Targets are tiny; pad the ragged tail with ignore_label so the kernel
    # needs no per-column bounds test and the (big, untouched) logits slab's
    # ragged last block is masked purely through the label mask.
    target_i32 = target.astype(jnp.int32)
    if npts_pad != npts:
        target_i32 = jnp.pad(target_i32, ((0, 0), (0, npts_pad - npts)),
                             constant_values=ignore_label)
    target3 = target_i32.reshape(b, 1, npts_pad)

    weighted = weight is not None
    kernel = _make_ce_mask_kernel(ignore_label=ignore_label, weighted=weighted)

    in_specs = [
        # logits: (b, c, npts) consumed in native layout; kernel sees (c, tile_n)
        # with points lane-dense.  The ragged last block is handled via the
        # padded-target mask, never by padding/reshaping the slab.
        pl.BlockSpec((pl.Squeezed(), c, tile_n), lambda bi, ni: (bi, 0, ni)),
        # targets: (b, 1, npts_pad) -> kernel sees (1, tile_n).
        pl.BlockSpec((pl.Squeezed(), 1, tile_n), lambda bi, ni: (bi, 0, ni)),
    ]
    args = [predict, target3]
    if weighted:
        args.append(weight.astype(jnp.float32).reshape(c, 1))
        in_specs.append(pl.BlockSpec((c, 1), lambda bi, ni: (0, 0)))

    out_specs = [pl.BlockSpec((1, 1, _LANE), lambda bi, ni: (bi, 0, 0)),
                 pl.BlockSpec((1, 1, _LANE), lambda bi, ni: (bi, 0, 0))]

    loss_part, w_part = pl.pallas_call(
        kernel,
        out_shape=(jax.ShapeDtypeStruct((b, 1, _LANE), jnp.float32),
                   jax.ShapeDtypeStruct((b, 1, _LANE), jnp.float32)),
        grid_spec=pltpu.PrefetchScalarGridSpec(
            num_scalar_prefetch=0,
            grid=(b, n_tiles),
            in_specs=in_specs,
            out_specs=out_specs,
            scratch_shapes=[pltpu.VMEM((1, tile_n), jnp.float32),   # loss partials
                            pltpu.VMEM((1, tile_n), jnp.float32)],  # weight partials
        ),
        compiler_params=pltpu.CompilerParams(
            # batch axis carries independent per-batch partial sums -> can be
            # megacore-sharded on v7x; point-tile axis is the reduction.
            dimension_semantics=("parallel", "arbitrary"),
            vmem_limit_bytes=_vmem_limit_bytes(
                c, tile_n, jnp.dtype(predict.dtype).itemsize, vmem_cap)),
    )(*args)

    loss_sum = jnp.sum(loss_part[:, 0, 0])
    w_sum = jnp.sum(w_part[:, 0, 0])

    if size_average:
        # F.cross_entropy mean is a weighted mean; unweighted -> sum/count.
        return jnp.where(w_sum > 0, loss_sum / w_sum, 0.0)
    # size_average=False -> (weighted) sum of per-point losses.
    return jnp.where(w_sum > 0, loss_sum, 0.0)


def _reference(predict, target, weight=None, *, size_average=True,
               ignore_label=IGNORE_LABEL):
    """Pure-JAX reference mirroring the PyTorch module."""
    b, c, npts = predict.shape
    logp = jax.nn.log_softmax(
        jnp.transpose(predict, (0, 2, 1)).astype(jnp.float32), axis=-1)
    tgt = target.astype(jnp.int32)
    valid = jnp.logical_and(tgt >= 0, tgt != ignore_label)
    tgt_c = jnp.clip(tgt, 0, c - 1)
    nll = -jnp.take_along_axis(logp, tgt_c[..., None], axis=-1)[..., 0]
    w = jnp.ones((c,), jnp.float32) if weight is None else weight.astype(jnp.float32)
    w_row = w[tgt_c] * valid.astype(jnp.float32)
    loss_sum = jnp.sum(nll * w_row)
    w_sum = jnp.sum(w_row)
    if size_average:
        return jnp.where(w_sum > 0, loss_sum / w_sum, 0.0)
    return jnp.where(w_sum > 0, loss_sum, 0.0)


if __name__ == "__main__":
    key = jax.random.PRNGKey(0)
    k1, k2, k3, k4, k5 = jax.random.split(key, 5)

    b, c, npts = 2, 4, 16
    predict = jax.random.normal(k1, (b, c, npts), dtype=jnp.float32)
    target = jax.random.randint(k2, (b, npts), 0, c, dtype=jnp.int32)

    # Sprinkle in ignored (999) and negative labels to exercise the mask.
    ign_mask = jax.random.bernoulli(k3, 0.2, (b, npts))
    neg_mask = jax.random.bernoulli(k4, 0.1, (b, npts))
    target = jnp.where(ign_mask, IGNORE_LABEL, target)
    target = jnp.where(neg_mask, -1, target)

    # 1) Unweighted, mean reduction (auto tile: full extent, single tile).
    loss = jax.block_until_ready(
        cross_entropy_mask(predict, target, size_average=True))
    ref = _reference(predict, target, size_average=True)
    assert jnp.allclose(loss, ref, atol=1e-5, rtol=1e-5), (loss, ref)

    # 2) Weighted, sum reduction.
    w = jax.random.uniform(k5, (c,), minval=0.5, maxval=2.0, dtype=jnp.float32)
    loss_w = jax.block_until_ready(
        cross_entropy_mask(predict, target, weight=w, size_average=False))
    ref_w = _reference(predict, target, weight=w, size_average=False)
    assert jnp.allclose(loss_w, ref_w, atol=1e-5, rtol=1e-5), (loss_w, ref_w)

    # 3) Tiled path with a ragged tail + bf16 logits (forced small tile so the
    #    multi-tile / padded-target code path is exercised at small shapes).
    b2, c2, npts2 = 2, 4, 200
    kk1, kk2 = jax.random.split(k1)
    pred2 = jax.random.normal(kk1, (b2, c2, npts2), dtype=jnp.float32)
    tgt2 = jax.random.randint(kk2, (b2, npts2), 0, c2, dtype=jnp.int32)
    tgt2 = jnp.where(jax.random.bernoulli(k3, 0.25, (b2, npts2)),
                     IGNORE_LABEL, tgt2)
    pred2_bf16 = pred2.astype(jnp.bfloat16)
    loss2 = jax.block_until_ready(
        cross_entropy_mask(pred2_bf16, tgt2, size_average=True, tile_n=128))
    ref2 = _reference(pred2_bf16.astype(jnp.float32), tgt2, size_average=True)
    assert jnp.allclose(loss2, ref2, atol=1e-4, rtol=1e-4), (loss2, ref2)

    # 4) All points ignored -> 0.
    tgt_all_ign = jnp.full((b, npts), IGNORE_LABEL, jnp.int32)
    loss0 = jax.block_until_ready(cross_entropy_mask(predict, tgt_all_ign))
    assert jnp.allclose(loss0, 0.0), loss0

    print("KERNEL_OK")
</pallas_src>

<mosaic_0001>
module attributes {stable_mosaic.version = 11 : i64} {
  func.func @kernel(%arg0: i32, %arg1: i32, %arg2: memref<1x4x16xf32, #tpu.memory_space<vmem>>, %arg3: memref<1x1x16xi32, #tpu.memory_space<vmem>>, %arg4: memref<1x1x128xf32, #tpu.memory_space<vmem>>, %arg5: memref<1x1x128xf32, #tpu.memory_space<vmem>>, %arg6: memref<1x16xf32, #tpu.memory_space<vmem>>, %arg7: memref<1x16xf32, #tpu.memory_space<vmem>>) attributes {dimension_semantics = [#tpu.dimension_semantics<parallel>, #tpu.dimension_semantics<arbitrary>], iteration_bounds = array<i64: 2, 1>, scalar_prefetch = 0 : i64, scratch_operands = 2 : i64, tpu.core_type = #tpu.core_type<tc>, window_params = [{transform_indices = @transform_0, window_bounds = array<i64: 1, 4, 16>}, {transform_indices = @transform_1, window_bounds = array<i64: 1, 1, 16>}, {transform_indices = @transform_2, window_bounds = array<i64: 1, 1, 128>}, {transform_indices = @transform_3, window_bounds = array<i64: 1, 1, 128>}]} {
    %c0_i32 = arith.constant 0 : i32
    %0 = arith.cmpi eq, %arg1, %c0_i32 : i32
    %1 = arith.extui %0 : i1 to i32
    %c0_i32_0 = arith.constant 0 : i32
    %2 = arith.cmpi ne, %1, %c0_i32_0 : i32
    scf.if %2 {
      %cst_23 = arith.constant 0.000000e+00 : f32
      %44 = vector.broadcast %cst_23 : f32 to vector<1x16xf32>
      %c0_24 = arith.constant 0 : index
      %c0_25 = arith.constant 0 : index
      %45 = vector.load %arg6[%c0_24, %c0_25] : memref<1x16xf32, #tpu.memory_space<vmem>>, vector<1x16xf32>
      tpu.vector_store %arg6[%c0_24, %c0_25], %44 {strides = array<i32>} : memref<1x16xf32, #tpu.memory_space<vmem>>, vector<1x16xf32>,
      %cst_26 = arith.constant 0.000000e+00 : f32
      %46 = vector.broadcast %cst_26 : f32 to vector<1x16xf32>
      %c0_27 = arith.constant 0 : index
      %c0_28 = arith.constant 0 : index
      %47 = vector.load %arg7[%c0_27, %c0_28] : memref<1x16xf32, #tpu.memory_space<vmem>>, vector<1x16xf32>
      tpu.vector_store %arg7[%c0_27, %c0_28], %46 {strides = array<i32>} : memref<1x16xf32, #tpu.memory_space<vmem>>, vector<1x16xf32>,
    } else {
    }
    %c0 = arith.constant 0 : index
    %c0_1 = arith.constant 0 : index
    %c0_2 = arith.constant 0 : index
    %3 = vector.load %arg2[%c0, %c0_1, %c0_2] : memref<1x4x16xf32, #tpu.memory_space<vmem>>, vector<1x4x16xf32>
    %4 = vector.shape_cast %3 : vector<1x4x16xf32> to vector<4x16xf32>
    %c0_3 = arith.constant 0 : index
    %c0_4 = arith.constant 0 : index
    %c0_5 = arith.constant 0 : index
    %5 = vector.load %arg3[%c0_3, %c0_4, %c0_5] : memref<1x1x16xi32, #tpu.memory_space<vmem>>, vector<1x1x16xi32>
    %6 = vector.shape_cast %5 : vector<1x1x16xi32> to vector<1x16xi32>
    %c0_i32_6 = arith.constant 0 : i32
    %7 = vector.broadcast %c0_i32_6 : i32 to vector<1x16xi32>
    %8 = arith.cmpi sge, %6, %7 : vector<1x16xi32>
    %c999_i32 = arith.constant 999 : i32
    %9 = vector.broadcast %c999_i32 : i32 to vector<1x16xi32>
    %10 = arith.cmpi ne, %6, %9 : vector<1x16xi32>
    %11 = arith.andi %8, %10 : vector<1x16xi1>
    %cst = arith.constant dense<0xFF800000> : vector<16xf32>
    %12 = vector.multi_reduction <maximumf>, %4, %cst [0] : vector<4x16xf32> to vector<16xf32>
    %13 = vector.shape_cast %12 : vector<16xf32> to vector<1x16xf32>
    %14 = vector.broadcast %13 : vector<1x16xf32> to vector<4x16xf32>
    %15 = arith.subf %4, %14 : vector<4x16xf32>
    %16 = math.exp %15 : vector<4x16xf32>
    %cst_7 = arith.constant dense<0.000000e+00> : vector<16xf32>
    %17 = vector.multi_reduction <add>, %16, %cst_7 [0] : vector<4x16xf32> to vector<16xf32>
    %18 = vector.shape_cast %17 : vector<16xf32> to vector<1x16xf32>
    %19 = math.log %18 : vector<1x16xf32>
    %20 = arith.addf %13, %19 : vector<1x16xf32>
    %21 = tpu.iota {dimensions = array<i32: 0>} : vector<4x16xi32>
    %22 = vector.broadcast %6 : vector<1x16xi32> to vector<4x16xi32>
    %23 = arith.cmpi eq, %21, %22 : vector<4x16xi32>
    %cst_8 = arith.constant 0.000000e+00 : f32
    %24 = vector.broadcast %cst_8 : f32 to vector<4x16xf32>
    %25 = arith.select %23, %4, %24 : vector<4x16xi1>, vector<4x16xf32>
    %cst_9 = arith.constant dense<0.000000e+00> : vector<16xf32>
    %26 = vector.multi_reduction <add>, %25, %cst_9 [0] : vector<4x16xf32> to vector<16xf32>
    %27 = vector.shape_cast %26 : vector<16xf32> to vector<1x16xf32>
    %cst_10 = arith.constant 1.000000e+00 : f32
    %28 = vector.broadcast %cst_10 : f32 to vector<1x16xf32>
    %c0_11 = arith.constant 0 : index
    %c0_12 = arith.constant 0 : index
    %29 = vector.load %arg6[%c0_11, %c0_12] : memref<1x16xf32, #tpu.memory_space<vmem>>, vector<1x16xf32>
    %30 = arith.subf %20, %27 : vector<1x16xf32>
    %31 = arith.mulf %30, %28 : vector<1x16xf32>
    %cst_13 = arith.constant 0.000000e+00 : f32
    %32 = vector.broadcast %cst_13 : f32 to vector<1x16xf32>
    %33 = arith.select %11, %31, %32 : vector<1x16xi1>, vector<1x16xf32>
    %34 = arith.addf %29, %33 : vector<1x16xf32>
    %c0_14 = arith.constant 0 : index
    %c0_15 = arith.constant 0 : index
    %35 = vector.load %arg6[%c0_14, %c0_15] : memref<1x16xf32, #tpu.memory_space<vmem>>, vector<1x16xf32>
    tpu.vector_store %arg6[%c0_14, %c0_15], %34 {strides = array<i32>} : memref<1x16xf32, #tpu.memory_space<vmem>>, vector<1x16xf32>,
    %c0_16 = arith.constant 0 : index
    %c0_17 = arith.constant 0 : index
    %36 = vector.load %arg7[%c0_16, %c0_17] : memref<1x16xf32, #tpu.memory_space<vmem>>, vector<1x16xf32>
    %cst_18 = arith.constant 0.000000e+00 : f32
    %37 = vector.broadcast %cst_18 : f32 to vector<1x16xf32>
    %38 = arith.select %11, %28, %37 : vector<1x16xi1>, vector<1x16xf32>
    %39 = arith.addf %36, %38 : vector<1x16xf32>
    %c0_19 = arith.constant 0 : index
    %c0_20 = arith.constant 0 : index
    %40 = vector.load %arg7[%c0_19, %c0_20] : memref<1x16xf32, #tpu.memory_space<vmem>>, vector<1x16xf32>
    tpu.vector_store %arg7[%c0_19, %c0_20], %39 {strides = array<i32>} : memref<1x16xf32, #tpu.memory_space<vmem>>, vector<1x16xf32>,
    %c0_i32_21 = arith.constant 0 : i32
    %41 = arith.cmpi eq, %arg1, %c0_i32_21 : i32
    %42 = arith.extui %41 : i1 to i32
    %c0_i32_22 = arith.constant 0 : i32
    %43 = arith.cmpi ne, %42, %c0_i32_22 : i32
    scf.if %43 {
      %cst_23 = arith.constant 0.000000e+00 : f32
      %44 = vector.broadcast %cst_23 : f32 to vector<1x1x128xf32>
      %c0_24 = arith.constant 0 : index
      %c0_25 = arith.constant 0 : index
      %45 = vector.load %arg6[%c0_24, %c0_25] : memref<1x16xf32, #tpu.memory_space<vmem>>, vector<1x16xf32>
      %46 = vector.shape_cast %45 : vector<1x16xf32> to vector<1x1x16xf32>
      %cst_26 = arith.constant dense<0.000000e+00> : vector<1xf32>
      %47 = vector.multi_reduction <add>, %46, %cst_26 [1, 2] : vector<1x1x16xf32> to vector<1xf32>
      %48 = vector.shape_cast %47 : vector<1xf32> to vector<1x1x1xf32>
      %49 = vector.extract %48[0, 0, 0] : f32 from vector<1x1x1xf32>
      %50 = vector.broadcast %49 : f32 to vector<1x1x128xf32>
      %51 = arith.addf %44, %50 : vector<1x1x128xf32>
      %c0_27 = arith.constant 0 : index
      %c0_28 = arith.constant 0 : index
      %c0_29 = arith.constant 0 : index
      %52 = vector.load %arg4[%c0_27, %c0_28, %c0_29] : memref<1x1x128xf32, #tpu.memory_space<vmem>>, vector<1x1x128xf32>
      tpu.vector_store %arg4[%c0_27, %c0_28, %c0_29], %51 {strides = array<i32>} : memref<1x1x128xf32, #tpu.memory_space<vmem>>, vector<1x1x128xf32>,
      %cst_30 = arith.constant 0.000000e+00 : f32
      %53 = vector.broadcast %cst_30 : f32 to vector<1x1x128xf32>
      %c0_31 = arith.constant 0 : index
      %c0_32 = arith.constant 0 : index
      %54 = vector.load %arg7[%c0_31, %c0_32] : memref<1x16xf32, #tpu.memory_space<vmem>>, vector<1x16xf32>
      %55 = vector.shape_cast %54 : vector<1x16xf32> to vector<1x1x16xf32>
      %cst_33 = arith.constant dense<0.000000e+00> : vector<1xf32>
      %56 = vector.multi_reduction <add>, %55, %cst_33 [1, 2] : vector<1x1x16xf32> to vector<1xf32>
      %57 = vector.shape_cast %56 : vector<1xf32> to vector<1x1x1xf32>
      %58 = vector.extract %57[0, 0, 0] : f32 from vector<1x1x1xf32>
      %59 = vector.broadcast %58 : f32 to vector<1x1x128xf32>
      %60 = arith.addf %53, %59 : vector<1x1x128xf32>
      %c0_34 = arith.constant 0 : index
      %c0_35 = arith.constant 0 : index
      %c0_36 = arith.constant 0 : index
      %61 = vector.load %arg5[%c0_34, %c0_35, %c0_36] : memref<1x1x128xf32, #tpu.memory_space<vmem>>, vector<1x1x128xf32>
      tpu.vector_store %arg5[%c0_34, %c0_35, %c0_36], %60 {strides = array<i32>} : memref<1x1x128xf32, #tpu.memory_space<vmem>>, vector<1x1x128xf32>,
    } else {
    }
    return
  }
  func.func @transform_0(%arg0: i32, %arg1: i32) -> (i32, i32, i32) {
    %c0_i32 = arith.constant 0 : i32
    %c0_i32_0 = arith.constant 0 : i32
    return %arg0, %c0_i32, %arg1 : i32, i32, i32
  }
  func.func @transform_1(%arg0: i32, %arg1: i32) -> (i32, i32, i32) {
    %c0_i32 = arith.constant 0 : i32
    %c0_i32_0 = arith.constant 0 : i32
    return %arg0, %c0_i32, %arg1 : i32, i32, i32
  }
  func.func @transform_2(%arg0: i32, %arg1: i32) -> (i32, i32, i32) {
    %c0_i32 = arith.constant 0 : i32
    %c0_i32_0 = arith.constant 0 : i32
    %c0_i32_1 = arith.constant 0 : i32
    return %arg0, %c0_i32, %c0_i32_0 : i32, i32, i32
  }
  func.func @transform_3(%arg0: i32, %arg1: i32) -> (i32, i32, i32) {
    %c0_i32 = arith.constant 0 : i32
    %c0_i32_0 = arith.constant 0 : i32
    %c0_i32_1 = arith.constant 0 : i32
    return %arg0, %c0_i32, %c0_i32_0 : i32, i32, i32
  }
}

</mosaic_0001>

<llo_original>
// kernel: tpu_custom_call.1
$region0: #{tpu_custom_call.1}
  #allocation0 [shape = 'u32[]', space=smem, size = 0x4, offset = 0x4, fixed_abs, tag = 'smem constant byte address 0x4 - core index']
  #allocation1 [shape = 'u32[144,128]{1,0:T(1,128)}', space=vmem, size = 0x12000, scoped, tag = 'internal scratch']
  #allocation2 [shape = 'f32[1,16]{1,0:T(1,128)}', space=vmem, size = 0x200, scoped, tag = 'scratch operand']
  #allocation3 [shape = 'f32[1,16]{1,0:T(1,128)}', space=vmem, size = 0x200, scoped, tag = 'scratch operand']
  %s0 = inlined_call_operand.hbm [shape: f32[2,4,16], index: 0, kind: input, shape index: {}]
  %s1 = inlined_call_operand.vmem [shape: s32[2,1,16], index: 1, kind: input, shape index: {}]
  %s2 = inlined_call_operand.hbm [shape: f32[2,1,128], index: 2, kind: output, shape index: {0}]
  %s3 = inlined_call_operand.hbm [shape: f32[2,1,128], index: 3, kind: output, shape index: {1}]
  %4 = xla_tuple %s2, %s3
  %s5 = sld [smem:[#allocation0]]
  $region61: #{tpu_custom_call.1} parent=0
    _
  %s7 = ssub.s32 1, %s5
  %s8 = scalar_select 0, %s7, %s5
  $region1: #{tpu_custom_call.1} parent=0
    #allocation4 [shape = 'u8[4096]{0}', space=vmem, size = 0x1000, scoped, tag = 'input window, operand 0']
    #allocation5 [shape = 's32[2]{0}', space=sflag, size = 0x8, scoped, tag = 'scoped memory for tpu_custom_call.1']
    #allocation6 [shape = 's32[2]{0}', space=sflag, size = 0x8, scoped, tag = 'scoped memory for tpu_custom_call.1']
    #allocation7 [shape = 'u8[1024]{0}', space=vmem, size = 0x400, scoped, tag = 'output window, operand 0']
    #allocation8 [shape = 'u8[1024]{0}', space=vmem, size = 0x400, scoped, tag = 'output window, operand 1']
    #allocation9 [shape = 's32[2]{0}', space=sflag, size = 0x8, scoped, tag = 'scoped memory for tpu_custom_call.1']
    %9 = vsyncpa [#allocation5], 0
    %s10 = scalar_lea.sflag [#allocation5], 1
    %11 = vsyncpa %s10, 0
    %12 = vsyncpa [#allocation6], 0
    %s13 = scalar_lea.sflag [#allocation6], 1
    %14 = vsyncpa %s13, 0
    %15 = vsyncpa [#allocation9], 0
    %s16 = scalar_lea.sflag [#allocation9], 1
    %17 = vsyncpa %s16, 0
    loop: start=0, step=1, limit=4
    $region2: #{tpu_custom_call.1} parent=1 // loop_pre_header
      _
    $region3: #{tpu_custom_call.1} parent=1 // loop_header
      %s19 = sphi 0, %s23
      %p20 = scmp.ge.s32.totalorder %s19, 4
      %s26 = sphi 0, %s38
      %s27 = sphi 0, %s34
      %s28 = sphi 0, %s26
      %s29 = sphi 0, %s27
      %s30 = sphi 0, %s28
      %s31 = sphi 0, %s29
      %s43 = sphi 0, %s45
      %s46 = sphi 0, %s43
      %s47 = sphi 0, %s46
      %s63 = sphi 0, %s47
      %s71 = sphi 0, %s73
      %s74 = sphi 0, %s71
      %s75 = sphi 0, %s74
      %s91 = sphi 0, %s75
      %s97 = sphi 0, %s99
      %s100 = sphi 0, %s97
      %s101 = sphi 0, %s100
      %s117 = sphi 0, %s101
      %s123 = sphi 0, %s125
      %s126 = sphi 0, %s123
      %s127 = sphi 0, %s126
      %s143 = sphi 0, %s127
    $region4: #{tpu_custom_call.1} parent=1 // loop_header_branch
      %22 = sbr.rel (%p20) target = $region8
    $region5: #{tpu_custom_call.1} parent=1 // loop_body
      %s24 = ssub.s32 %s19, 1
      %s25 = ssub.s32 %s19, 2
      %s32 = sadd.s32 1, %s27
      %p33 = scmp.ge.s32.totalorder %s32, 1
      %s34 = scalar_select %p33, 0, %s32
      %s35 = sadd.s32 1, %s26
      %s36 = scalar_select %p33, %s35, %s26
      %p37 = scmp.ge.s32.totalorder %s36, 2
      %s38 = scalar_select %p37, 0, %s36
      %s39 = ssub.s32 %s26, %s38
      %s40 = ssub.s32 %s27, %s34
      %s41 = sor.u32 %s39, %s40
      %p42 = scmp.eq.s32.totalorder %s41, 0
      %s44 = sadd.s32 %s43, 1
      %s45 = scalar_select %p42, %s43, %s44
      %p48 = pneg %p42
      %p49 = scmp.eq.s32.totalorder %s19, 1
      %p50 = por %p48, %p49
      %p51 = scmp.ne.s32.totalorder %s43, %s46
      %p52 = scmp.eq.s32.totalorder %s19, 0
      %p53 = por %p51, %p52
      %p54 = scmp.ne.s32.totalorder %s43, %s46
      %p55 = scmp.eq.s32.totalorder %s24, 1
      %p56 = por %p54, %p55
      %p57 = scmp.ne.s32.totalorder %s46, %s47
      %p58 = scmp.eq.s32.totalorder %s24, 0
      %p59 = por %p57, %p58
      %p60 = scmp.ne.s32.totalorder %s46, %s47
      %p61 = scmp.eq.s32.totalorder %s25, 1
      %p62 = por %p60, %p61
      %p64 = scmp.ne.s32.totalorder %s47, %s63
      %p65 = scmp.eq.s32.totalorder %s25, 0
      %p66 = por %p64, %p65
      %s67 = ssub.s32 %s26, %s38
      %s68 = ssub.s32 %s27, %s34
      %s69 = sor.u32 %s67, %s68
      %p70 = scmp.eq.s32.totalorder %s69, 0
      %s72 = sadd.s32 %s71, 1
      %s73 = scalar_select %p70, %s71, %s72
      %p76 = pneg %p70
      %p77 = scmp.eq.s32.totalorder %s19, 1
      %p78 = por %p76, %p77
      %p79 = scmp.ne.s32.totalorder %s71, %s74
      %p80 = scmp.eq.s32.totalorder %s19, 0
      %p81 = por %p79, %p80
      %p82 = scmp.ne.s32.totalorder %s71, %s74
      %p83 = scmp.eq.s32.totalorder %s24, 1
      %p84 = por %p82, %p83
      %p85 = scmp.ne.s32.totalorder %s74, %s75
      %p86 = scmp.eq.s32.totalorder %s24, 0
      %p87 = por %p85, %p86
      %p88 = scmp.ne.s32.totalorder %s74, %s75
      %p89 = scmp.eq.s32.totalorder %s25, 1
      %p90 = por %p88, %p89
      %p92 = scmp.ne.s32.totalorder %s75, %s91
      %p93 = scmp.eq.s32.totalorder %s25, 0
      %p94 = por %p92, %p93
      %s95 = ssub.s32 %s26, %s38
      %p96 = scmp.eq.s32.totalorder %s95, 0
      %s98 = sadd.s32 %s97, 1
      %s99 = scalar_select %p96, %s97, %s98
      %p102 = pneg %p96
      %p103 = scmp.eq.s32.totalorder %s19, 1
      %p104 = por %p102, %p103
      %p105 = scmp.ne.s32.totalorder %s97, %s100
      %p106 = scmp.eq.s32.totalorder %s19, 0
      %p107 = por %p105, %p106
      %p108 = scmp.ne.s32.totalorder %s97, %s100
      %p109 = scmp.eq.s32.totalorder %s24, 1
      %p110 = por %p108, %p109
      %p111 = scmp.ne.s32.totalorder %s100, %s101
      %p112 = scmp.eq.s32.totalorder %s24, 0
      %p113 = por %p111, %p112
      %p114 = scmp.ne.s32.totalorder %s100, %s101
      %p115 = scmp.eq.s32.totalorder %s25, 1
      %p116 = por %p114, %p115
      %p118 = scmp.ne.s32.totalorder %s101, %s117
      %p119 = scmp.eq.s32.totalorder %s25, 0
      %p120 = por %p118, %p119
      %s121 = ssub.s32 %s26, %s38
      %p122 = scmp.eq.s32.totalorder %s121, 0
      %s124 = sadd.s32 %s123, 1
      %s125 = scalar_select %p122, %s123, %s124
      %p128 = pneg %p122
      %p129 = scmp.eq.s32.totalorder %s19, 1
      %p130 = por %p128, %p129
      %p131 = scmp.ne.s32.totalorder %s123, %s126
      %p132 = scmp.eq.s32.totalorder %s19, 0
      %p133 = por %p131, %p132
      %p134 = scmp.ne.s32.totalorder %s123, %s126
      %p135 = scmp.eq.s32.totalorder %s24, 1
      %p136 = por %p134, %p135
      %p137 = scmp.ne.s32.totalorder %s126, %s127
      %p138 = scmp.eq.s32.totalorder %s24, 0
      %p139 = por %p137, %p138
      %p140 = scmp.ne.s32.totalorder %s126, %s127
      %p141 = scmp.eq.s32.totalorder %s25, 1
      %p142 = por %p140, %p141
      %p144 = scmp.ne.s32.totalorder %s127, %s143
      %p145 = scmp.eq.s32.totalorder %s25, 0
      %p146 = por %p144, %p145
      %p147 = scmp.le.s32.totalorder 1, %s19
      %p148 = scmp.lt.s32.totalorder %s19, 3
      %p149 = pnand %p147, %p148
      %p150 = pneg %p149
      // Predicated region
      $region9: #{tpu_custom_call.1} parent=5 // pred_check
        _
      $region10: #{tpu_custom_call.1} parent=5 // pred_check_branch
        %152 = sbr.rel (%p149) target = $region12
      $region11: #{tpu_custom_call.1} parent=5 // pred_region
        %s153 = ssub.s32 %s19, 1
      $region12: #{tpu_custom_call.1} parent=5 // pred_fallthru
        _
      %p154 = scmp.lt.s32.totalorder %s19, 2
      // Predicated region
      $region13: #{tpu_custom_call.1} parent=5 // pred_check
        %p155 = pneg %p154
      $region14: #{tpu_custom_call.1} parent=5 // pred_check_branch
        %157 = sbr.rel (%p155) target = $region16
      $region15: #{tpu_custom_call.1} parent=5 // pred_region
        // Predicated region
        $region17: #{tpu_custom_call.1} parent=15 // pred_check
          %p158 = pneg %p53
        $region18: #{tpu_custom_call.1} parent=15 // pred_check_branch
          %160 = sbr.rel (%p158) target = $region20
        $region19: #{tpu_custom_call.1} parent=15 // pred_region
          %s161 = sand.u32 %s43, 1
          %s162 = scalar_lea.sflag [#allocation5], %s161
          %s163 = sand.u32 %s43, 1
          %s164 = smul.addr %s163, 4
          %s165 = scalar_lea.vmem [#allocation4], %s164
          %s167 = ssub.s32 64, 64
          %168 = vsyncadd %s162, %s167
          %s169 = sadd.s32 %s27, %s26
          %s170 = smul.addr %s169, 64
          %s171 = scalar_lea.hbm %s0, %s170
          %s173 = sshll.u32 %s165, 4
          %s174 = int_to_ptr.vmem [resolvable:$true] %s173
          %176 = dma.hbm_to_vmem [thread:$0]  %s171, 64, %s174, %s162
        $region20: #{tpu_custom_call.1} parent=15 // pred_fallthru
          _
        // Predicated region
        $region21: #{tpu_custom_call.1} parent=15 // pred_check
          %p177 = pneg %p81
        $region22: #{tpu_custom_call.1} parent=15 // pred_check_branch
          %179 = sbr.rel (%p177) target = $region24
        $region23: #{tpu_custom_call.1} parent=15 // pred_region
          %p180 = scmp.lt.s32.totalorder %s26, 1
          %s181 = scalar_select %p180, %s26, 1
          %p182 = scmp.lt.s32.totalorder %s27, 0
          %s183 = scalar_select %p182, %s27, 0
          %s184 = sadd.s32 %s183, %s181
          %s185 = scalar_lea.vmem %s1, %s184
        $region24: #{tpu_custom_call.1} parent=15 // pred_fallthru
          _
      $region16: #{tpu_custom_call.1} parent=5 // pred_fallthru
        _
      %p186 = scmp.le.s32.totalorder 1, %s19
      %p187 = scmp.lt.s32.totalorder %s19, 3
      %p188 = pnand %p186, %p187
      %p189 = pneg %p188
      // Predicated region
      $region25: #{tpu_custom_call.1} parent=5 // pred_check
        _
      $region26: #{tpu_custom_call.1} parent=5 // pred_check_branch
        %191 = sbr.rel (%p188) target = $region28
      $region27: #{tpu_custom_call.1} parent=5 // pred_region
        %s192 = ssub.s32 %s19, 1
        %s193 = sand.u32 %s46, 1
        %s194 = scalar_lea.sflag [#allocation5], %s193
        %s195 = sand.u32 %s46, 1
        %s196 = smul.addr %s195, 4
        %s197 = scalar_lea.vmem [#allocation4], %s196
        // Predicated region
        $region29: #{tpu_custom_call.1} parent=27 // pred_check
          %p198 = pneg %p59
        $region30: #{tpu_custom_call.1} parent=27 // pred_check_branch
          %200 = sbr.rel (%p198) target = $region32
        $region31: #{tpu_custom_call.1} parent=27 // pred_region
          %201 = dma.done %s194, 64
        $region32: #{tpu_custom_call.1} parent=27 // pred_fallthru
          _
        %s202 = sand.u32 %s46, 1
        %s203 = scalar_lea.sflag [#allocation5], %s202
        %s204 = sand.u32 %s46, 1
        %s205 = smul.addr %s204, 4
        %s206 = scalar_lea.vmem [#allocation4], %s205
        %p207 = pneg %p59
        %p208 = pneg %p56
        %p209 = scmp.lt.s32.totalorder %s28, 1
        %s210 = scalar_select %p209, %s28, 1
        %p211 = scmp.lt.s32.totalorder %s29, 0
        %s212 = scalar_select %p211, %s29, 0
        %s213 = sadd.s32 %s212, %s210
        %s214 = scalar_lea.vmem %s1, %s213
        %p215 = pneg %p87
        %p216 = pneg %p84
        %p217 = pneg %p113
        %p218 = pneg %p110
        %s219 = sand.u32 %s100, 1
        %s220 = scalar_lea.sflag [#allocation6], %s219
        %s221 = sand.u32 %s100, 1
        %s222 = scalar_lea.vmem [#allocation7], %s221
        %p223 = pneg %p139
        %p224 = pneg %p136
        %s225 = sand.u32 %s126, 1
        %s226 = scalar_lea.sflag [#allocation9], %s225
        %s227 = sand.u32 %s126, 1
        %s228 = scalar_lea.vmem [#allocation8], %s227
        %p229 = scmp.lt.s32.totalorder %s28, 1
        %s230 = scalar_select %p229, %s28, 1
        %p231 = scmp.lt.s32.totalorder %s29, 0
        %s232 = scalar_select %p231, %s29, 0
        %s233 = sadd.s32 %s232, %s230
        %s234 = scalar_lea.vmem %s1, %s233
        %p235 = scmp.eq.s32.totalorder %s29, 0
        // Predicated region
        $region33: #{tpu_custom_call.1} parent=27 // pred_check
          %p236 = pneg %p235
        $region34: #{tpu_custom_call.1} parent=27 // pred_check_branch
          %238 = sbr.rel (%p236) target = $region36
        $region35: #{tpu_custom_call.1} parent=27 // pred_region
          %vm239 = vcmask 122880
          %240 = vst.msk [vmem:[#allocation2] sm:$0x1] %vm239, 0.0
          %241 = vst.msk [vmem:[#allocation3] sm:$0x1] %vm239, 0.0
        $region36: #{tpu_custom_call.1} parent=27 // pred_fallthru
          _
        %v242 = vld [vmem:[%s197] sm:$0xf]
        %v243 = vld [vmem:[%s234] sm:$0x1]
        %vm244 = vcmp.ge.s32.totalorder %v243, 0
        %vm245 = vcmp.ne.s32.totalorder %v243, 999
        %vm246 = vmand %vm244, %vm245
        %vm247 = vcmask 125952
        %v248 = vsel %vm247, %v242, -inf
        %v249 = vrot.slane %v248, 4
        %v250 = vmax.f32 %v248, %v249
        %v251 = vrot.slane %v250, 2
        %v252 = vmax.f32 %v250, %v251
        %v253 = vrot.slane %v252, 1
        %v254 = vmax.f32 %v252, %v253
        %v255 = vsub.f32 %v242, %v254
        %v256 = vmul.f32 %v255, 1.442695
        %v257 = vpow.pop %v256
        %v258 = vsel %vm247, %v257, 0.0
        %v259 = vrot.slane %v258, 4
        %v260 = vadd.f32 %v258, %v259
        %v261 = vrot.slane %v260, 2
        %v262 = vadd.f32 %v260, %v261
        %v263 = vrot.slane %v262, 1
        %v264 = vadd.f32 %v262, %v263
        %v265 = vlog2.pop %v264
        %v266 = vmul.f32 %v265, 0.6931472
        %v267 = vadd.f32 %v254, %v266
        %v268 = vlaneseq
        %v269 = vshrl.u32 %v268, 7
        %v270 = vlaneseq
        %v271 = vshrl.u32 %v270, 7
        %v272 = vsub.s32 0, %v271
        %v273 = vrot.slane %v243, %v272
        %vm274 = vcmp.eq.s32.totalorder %v269, %v273
        %v275 = vsel %vm274, %v242, 0.0
        %v276 = vsel %vm247, %v275, 0.0
        %v277 = vrot.slane %v276, 4
        %v278 = vadd.f32 %v276, %v277
        %v279 = vrot.slane %v278, 2
        %v280 = vadd.f32 %v278, %v279
        %v281 = vrot.slane %v280, 1
        %v282 = vadd.f32 %v280, %v281
        %v283 = vld [vmem:[#allocation2] sm:$0x1]
        %v284 = vsub.f32 %v267, %v282
        %v285 = vsel %vm246, %v284, 0.0
        %v286 = vadd.f32 %v283, %v285
        %vm287 = vcmask 122880
        %288 = vst.msk [vmem:[#allocation2] sm:$0x1] %vm287, %v286
        %v289 = vld [vmem:[#allocation3] sm:$0x1]
        %v290 = vsel %vm246, 1.0, 0.0
        %v291 = vadd.f32 %v289, %v290
        %292 = vst.msk [vmem:[#allocation3] sm:$0x1] %vm287, %v291
        // Predicated region
        $region37: #{tpu_custom_call.1} parent=27 // pred_check
          %p293 = pneg %p235
        $region38: #{tpu_custom_call.1} parent=27 // pred_check_branch
          %295 = sbr.rel (%p293) target = $region40
        $region39: #{tpu_custom_call.1} parent=27 // pred_region
          %v296 = vld [vmem:[#allocation2] sm:$0x1]
          %v297 = vsel %vm287, %v296, 0.0
          %298 = vadd.xlane.f32.xlu0 %v297
          %v299 = vpop.xlane.xlu0 %298
          %v300 = vrot.slane %v299, 4
          %v301 = vadd.f32 %v299, %v300
          %v302 = vrot.slane %v301, 2
          %v303 = vadd.f32 %v301, %v302
          %v304 = vrot.slane %v303, 1
          %v305 = vadd.f32 %v303, %v304
          %s306 = vtos %v305
          %v307 = vstv %s306
          %v308 = vadd.f32 %v307, 0.0
          %309 = vst [vmem:[%s222] sm:$0x1] %v308
          %v310 = vld [vmem:[#allocation3] sm:$0x1]
          %v311 = vsel %vm287, %v310, 0.0
          %312 = vadd.xlane.f32.xlu0 %v311
          %v313 = vpop.xlane.xlu0 %312
          %v314 = vrot.slane %v313, 4
          %v315 = vadd.f32 %v313, %v314
          %v316 = vrot.slane %v315, 2
          %v317 = vadd.f32 %v315, %v316
          %v318 = vrot.slane %v317, 1
          %v319 = vadd.f32 %v317, %v318
          %s320 = vtos %v319
          %v321 = vstv %s320
          %v322 = vadd.f32 %v321, 0.0
          %323 = vst [vmem:[%s228] sm:$0x1] %v322
        $region40: #{tpu_custom_call.1} parent=27 // pred_fallthru
          _
        %s324 = sand.u32 %s100, 1
        %s325 = scalar_lea.sflag [#allocation6], %s324
        %s326 = sand.u32 %s100, 1
        %s327 = scalar_lea.vmem [#allocation7], %s326
        %s328 = sand.u32 %s126, 1
        %s329 = scalar_lea.sflag [#allocation9], %s328
        %s330 = sand.u32 %s126, 1
        %s331 = scalar_lea.vmem [#allocation8], %s330
        // Predicated region
        $region41: #{tpu_custom_call.1} parent=27 // pred_check
          %p332 = pneg %p110
        $region42: #{tpu_custom_call.1} parent=27 // pred_check_branch
          %334 = sbr.rel (%p332) target = $region44
        $region43: #{tpu_custom_call.1} parent=27 // pred_region
          %s336 = ssub.s32 16, 16
          %337 = vsyncadd %s325, %s336
          %s338 = smul.addr %s28, 16
          %s339 = scalar_lea.hbm %s2, %s338
          %s341 = sshll.u32 %s327, 4
          %s342 = int_to_ptr.vmem [resolvable:$true] %s341
          %344 = dma.vmem_to_hbm [thread:$0]  %s342, 16, %s339, %s325
        $region44: #{tpu_custom_call.1} parent=27 // pred_fallthru
          _
        // Predicated region
        $region45: #{tpu_custom_call.1} parent=27 // pred_check
          %p345 = pneg %p136
        $region46: #{tpu_custom_call.1} parent=27 // pred_check_branch
          %347 = sbr.rel (%p345) target = $region48
        $region47: #{tpu_custom_call.1} parent=27 // pred_region
          %s349 = ssub.s32 16, 16
          %350 = vsyncadd %s329, %s349
          %s351 = smul.addr %s28, 16
          %s352 = scalar_lea.hbm %s3, %s351
          %s354 = sshll.u32 %s331, 4
          %s355 = int_to_ptr.vmem [resolvable:$true] %s354
          %357 = dma.vmem_to_hbm [thread:$0]  %s355, 16, %s352, %s329
        $region48: #{tpu_custom_call.1} parent=27 // pred_fallthru
          _
      $region28: #{tpu_custom_call.1} parent=5 // pred_fallthru
        _
      %p358 = scmp.le.s32.totalorder 2, %s19
      // Predicated region
      $region49: #{tpu_custom_call.1} parent=5 // pred_check
        %p359 = pneg %p358
      $region50: #{tpu_custom_call.1} parent=5 // pred_check_branch
        %361 = sbr.rel (%p359) target = $region52
      $region51: #{tpu_custom_call.1} parent=5 // pred_region
        %s362 = ssub.s32 %s19, 2
        // Predicated region
        $region53: #{tpu_custom_call.1} parent=51 // pred_check
          %p363 = pneg %p116
        $region54: #{tpu_custom_call.1} parent=51 // pred_check_branch
          %365 = sbr.rel (%p363) target = $region56
        $region55: #{tpu_custom_call.1} parent=51 // pred_region
          %s366 = sand.u32 %s101, 1
          %s367 = scalar_lea.sflag [#allocation6], %s366
          %s368 = sand.u32 %s101, 1
          %s369 = scalar_lea.vmem [#allocation7], %s368
          %370 = dma.done %s367, 16
        $region56: #{tpu_custom_call.1} parent=51 // pred_fallthru
          _
        // Predicated region
        $region57: #{tpu_custom_call.1} parent=51 // pred_check
          %p371 = pneg %p142
        $region58: #{tpu_custom_call.1} parent=51 // pred_check_branch
          %373 = sbr.rel (%p371) target = $region60
        $region59: #{tpu_custom_call.1} parent=51 // pred_region
          %s374 = sand.u32 %s127, 1
          %s375 = scalar_lea.sflag [#allocation9], %s374
          %s376 = sand.u32 %s127, 1
          %s377 = scalar_lea.vmem [#allocation8], %s376
          %378 = dma.done %s375, 16
        $region60: #{tpu_custom_call.1} parent=51 // pred_fallthru
          _
      $region52: #{tpu_custom_call.1} parent=5 // pred_fallthru
        _
    $region6: #{tpu_custom_call.1} parent=1 // loop_footer
      %s23 = sadd.s32 1, %s19
    $region7: #{tpu_custom_call.1} parent=1 // loop_footer_branch
      %18 = sbr.rel target = $region3
    $region8: #{tpu_custom_call.1} parent=1 // loop_exit
      _
    %379 = vsyncpa [#allocation5], 1
    %s380 = scalar_lea.sflag [#allocation5], 1
    %381 = vsyncpa %s380, 1
    %382 = vsyncpa [#allocation6], 1
    %s383 = scalar_lea.sflag [#allocation6], 1
    %384 = vsyncpa %s383, 1
    %385 = vsyncpa [#allocation9], 1
    %s386 = scalar_lea.sflag [#allocation9], 1
    %387 = vsyncpa %s386, 1

</llo_original>
